<compile_context>
chip_gen: v5e
topology: v5e:2x2
jax: 0.10.0
libtpu: 0.0.40
codegen_flags: <defaults>
</compile_context>

<pallas_src>
import numpy as np
import jax
import jax.numpy as jnp
from jax import lax
from jax.experimental import pallas as pl
from jax.experimental.pallas import tpu as pltpu

NEG = -1.0e9          # finite "minus infinity" for padded classes (keeps exp/log NaN-free)
_LANE = 128
_JC = 8               # Viterbi target-class chunk (sublane-sized) -> small live intermediates


# ----------------------------------------------------------------------------
# allowed_transitions (BIO scheme, include_start_end=True) + constraint matrix
# ----------------------------------------------------------------------------
def _split_tag(name):
    name = name.lower()
    if name in ("start", "end"):
        return name, ""
    return name[:1], name[2:]


def _bio_allowed(from_tag, from_label, to_tag, to_label):
    if to_tag == "start" or from_tag == "end":
        return False
    if from_tag == "start":
        return to_tag in ("b", "o")
    if to_tag == "end":
        return from_tag in ("b", "i", "o")
    if from_tag in ("b", "i"):
        return to_tag in ("b", "o") or (to_tag == "i" and from_label == to_label)
    if from_tag == "o":
        return to_tag in ("b", "o")
    return False


def allowed_transitions_bio(label_names, include_start_end=True):
    num_tags = len(label_names)
    start_idx, end_idx = num_tags, num_tags + 1
    items = list(enumerate(label_names))
    if include_start_end:
        items += [(start_idx, "start"), (end_idx, "end")]
    allowed = []
    for fid, flabel in items:
        ftag, flab = _split_tag(flabel)
        for tid, tlabel in items:
            ttag, tlab = _split_tag(tlabel)
            if _bio_allowed(ftag, flab, ttag, tlab):
                allowed.append((fid, tid))
    return allowed


def build_constraint(label_names):
    C = len(label_names)
    con = np.full((C + 2, C + 2), -10000.0, dtype=np.float32)
    for f, t in allowed_transitions_bio(label_names, include_start_end=True):
        con[f, t] = 0.0
    return con


# ----------------------------------------------------------------------------
# tiling helpers
# ----------------------------------------------------------------------------
def _round_up(x, m):
    return ((x + m - 1) // m) * m


def _batch_tile(Bp):
    # prefer >= 2 batch tiles so the "parallel" axis can shard across TensorCores (v7x)
    for cand in (64, 32, 16, 8):
        if Bp % cand == 0 and Bp // cand >= 2:
            return cand
    for cand in (64, 32, 16, 8):
        if Bp % cand == 0:
            return cand
    return Bp


def _time_tiling(L, target=128):
    Lt = min(L, target)
    Lp = _round_up(L, Lt)        # pad time instead of searching divisors (no degenerate Lt)
    return Lt, Lp


def _vmem_limit():
    cap = 64 * 1024 * 1024       # conservative default if the query fails
    try:
        cap = int(pltpu.get_tpu_info().vmem_capacity_bytes)
    except Exception:
        pass
    # v5e/v6e (128 MiB) -> 64 MiB scoped; v7x (64 MiB) -> stay at the 32 MiB default
    return int(min(96 * 1024 * 1024, max(32 * 1024 * 1024, cap // 2)))


def _compiler_params():
    return pltpu.CompilerParams(
        dimension_semantics=("parallel", "arbitrary"),
        vmem_limit_bytes=_vmem_limit(),
    )


def _pad_fc(fc_w, fc_b, Cpad):
    C, H = fc_w.shape
    w_pad = (jnp.zeros((H, Cpad), jnp.float32)
             .at[:, :C].set(jnp.transpose(fc_w).astype(jnp.float32))
             .astype(jnp.bfloat16))                  # bf16 MXU operand / HBM stream
    # NEG bias on padded classes -> padded emissions can never win / contribute
    b_pad = jnp.full((1, Cpad), NEG, jnp.float32).at[0, :C].set(fc_b.astype(jnp.float32))
    return w_pad, b_pad


# ----------------------------------------------------------------------------
# Kernel 1: CRF negative log-likelihood (fused fc + forward algorithm + gold emission)
#   grid = (batch tiles [parallel], time chunks [arbitrary]); scalar prefetch = per-tile maxlen
# ----------------------------------------------------------------------------
def crf_loss_kernel(maxlen_ref, x_ref, tags_ref, seqlen_ref, gold0_ref,
                    w_ref, b_ref, exp_trans_ref, tmax_ref, start_ref, end_ref,
                    out_ref, emit_ref, alpha_ref, gold_ref):
    Lt, bt, _ = x_ref.shape
    Cpad = exp_trans_ref.shape[0]
    b_idx = pl.program_id(0)
    t_idx = pl.program_id(1)
    nt = pl.num_programs(1)
    t_start = t_idx * Lt

    seqlen = seqlen_ref[...]            # (bt, 1) int32
    tmax = tmax_ref[...]                # (1, Cpad)  colmax(trans)
    start_t = start_ref[...]            # (1, Cpad)
    end_t = end_ref[...]                # (1, Cpad)
    iota_c = lax.broadcasted_iota(jnp.int32, (bt, Cpad), 1)

    @pl.when(t_start < maxlen_ref[b_idx])           # skip fully-masked time chunks
    def _():
        w = w_ref[...]                              # (H, Cpad) bf16
        bvec = b_ref[...]                           # (1, Cpad) f32
        exp_trans = exp_trans_ref[...]              # (Cpad, Cpad) exp(trans - colmax)

        # fused fc: one dependence-free MXU matmul per timestep, OFF the recursion chain
        def emit_body(lt, c):
            emit_ref[lt] = (jnp.dot(x_ref[lt], w, preferred_element_type=jnp.float32) + bvec)
            return c
        lax.fori_loop(0, Lt, emit_body, 0)

        @pl.when(t_idx == 0)
        def _():
            emit0 = emit_ref[0]
            oh0 = (iota_c == tags_ref[0]).astype(jnp.float32)
            alpha_ref[...] = emit0 + start_t        # assumes mask[:, 0] == 1
            emit_g0 = jnp.sum(emit0 * oh0, axis=-1, keepdims=True)
            # gold0 holds the wrapper-precomputed transition + start + end gold score
            gold_ref[...] = gold0_ref[...] + jnp.where(seqlen > 0, emit_g0, 0.0)

        def step(lt, c):
            gt = t_start + lt
            alpha = alpha_ref[...]                  # (bt, Cpad)
            emit = emit_ref[lt]                     # (bt, Cpad)
            m_t = gt < seqlen                       # (bt, 1) prefix mask from lengths

            # forward recursion via MXU matmul:
            #   new_alpha[b, j] = emit[b, j] + logsumexp_i(alpha[b, i] + trans[i, j])
            mx = jnp.max(alpha, axis=-1, keepdims=True)
            p = jnp.exp(alpha - mx)
            s = jnp.dot(p, exp_trans, preferred_element_type=jnp.float32)
            new_alpha = emit + mx + tmax + jnp.log(jnp.maximum(s, 1e-37))
            alpha_ref[...] = jnp.where(m_t, new_alpha, alpha)

            # gold emission term (off the serial chain; fills otherwise-free VPU/XLU slots)
            oh_t = (iota_c == tags_ref[lt]).astype(jnp.float32)
            emit_g = jnp.sum(emit * oh_t, axis=-1, keepdims=True)
            gold_ref[...] = gold_ref[...] + jnp.where(m_t, emit_g, 0.0)
            return c

        lt0 = jnp.where(t_idx == 0, 1, 0)           # chunk 0 consumed lt=0 in the init
        lax.fori_loop(lt0, Lt, step, 0)

    @pl.when(t_idx == nt - 1)
    def _():
        final = alpha_ref[...] + end_t
        fmax = jnp.max(final, axis=-1, keepdims=True)
        norm = jnp.log(jnp.sum(jnp.exp(final - fmax), axis=-1, keepdims=True)) + fmax
        out_ref[...] = norm - gold_ref[...]


def crf_nll(inputs, tags, mask, fc_w, fc_b, trans_m, start_scores, end_scores):
    B, L, H = inputs.shape
    C = fc_w.shape[0]
    Cpad = _round_up(max(C, _LANE), _LANE)
    Bp = _round_up(B, 8)
    bt = _batch_tile(Bp)
    Lt, Lp = _time_tiling(L)
    nb, nt = Bp // bt, Lp // Lt

    tags_i = tags.astype(jnp.int32)
    mask_f = mask.astype(jnp.float32)
    seq_len = jnp.sum(mask_f, axis=1).astype(jnp.int32)                       # (B,)

    # gold-path transition + start + end score, hoisted out of the kernel (cheap XLA gather)
    trans_sc = trans_m.astype(jnp.float32)[tags_i[:, :-1], tags_i[:, 1:]]     # (B, L-1)
    gold0 = jnp.sum(trans_sc * mask_f[:, 1:], axis=1)
    gold0 = gold0 + start_scores.astype(jnp.float32)[tags_i[:, 0]]
    last_idx = jnp.clip(seq_len - 1, 0, L - 1)
    last_tag = jnp.take_along_axis(tags_i, last_idx[:, None], axis=1)[:, 0]
    gold0 = (gold0 + end_scores.astype(jnp.float32)[last_tag]).reshape(B, 1)

    # pad batch to a multiple of 8 and time to a multiple of the chunk; go time-major
    x_pad = jnp.pad(inputs.astype(jnp.float32), ((0, Bp - B), (0, Lp - L), (0, 0)))
    tags_pad = jnp.pad(tags_i, ((0, Bp - B), (0, Lp - L)))
    x_lbh = jnp.transpose(x_pad, (1, 0, 2)).astype(jnp.bfloat16)              # (Lp, Bp, H)
    tags_lb1 = jnp.transpose(tags_pad, (1, 0))[..., None]                     # (Lp, Bp, 1)
    seq_len_p = jnp.pad(seq_len, (0, Bp - B))
    seqlen_b1 = seq_len_p.reshape(Bp, 1)
    gold0_p = jnp.pad(gold0, ((0, Bp - B), (0, 0)))
    maxlen = seq_len_p.reshape(nb, bt).max(axis=1).astype(jnp.int32)          # (nb,)

    w_pad, b_pad = _pad_fc(fc_w, fc_b, Cpad)
    trans_pad = jnp.full((Cpad, Cpad), NEG, jnp.float32).at[:C, :C].set(
        trans_m.astype(jnp.float32))
    tmax = jnp.max(trans_pad, axis=0, keepdims=True)              # (1, Cpad)
    exp_trans = jnp.exp(trans_pad - tmax)                         # <= 1; padded source rows -> 0
    start_pad = jnp.full((1, Cpad), NEG, jnp.float32).at[0, :C].set(
        start_scores.astype(jnp.float32))
    end_pad = jnp.full((1, Cpad), NEG, jnp.float32).at[0, :C].set(
        end_scores.astype(jnp.float32))

    grid_spec = pltpu.PrefetchScalarGridSpec(
        num_scalar_prefetch=1,
        grid=(nb, nt),
        in_specs=[
            pl.BlockSpec((Lt, bt, H), lambda b, t, ml: (t, b, 0)),
            pl.BlockSpec((Lt, bt, 1), lambda b, t, ml: (t, b, 0)),
            pl.BlockSpec((bt, 1), lambda b, t, ml: (b, 0)),
            pl.BlockSpec((bt, 1), lambda b, t, ml: (b, 0)),
            pl.BlockSpec((H, Cpad), lambda b, t, ml: (0, 0)),
            pl.BlockSpec((1, Cpad), lambda b, t, ml: (0, 0)),
            pl.BlockSpec((Cpad, Cpad), lambda b, t, ml: (0, 0)),
            pl.BlockSpec((1, Cpad), lambda b, t, ml: (0, 0)),
            pl.BlockSpec((1, Cpad), lambda b, t, ml: (0, 0)),
            pl.BlockSpec((1, Cpad), lambda b, t, ml: (0, 0)),
        ],
        out_specs=pl.BlockSpec((bt, 1), lambda b, t, ml: (b, 0)),
        scratch_shapes=[
            pltpu.VMEM((Lt, bt, Cpad), jnp.float32),   # chunk emissions
            pltpu.VMEM((bt, Cpad), jnp.float32),       # alpha (carried across time chunks)
            pltpu.VMEM((bt, 1), jnp.float32),          # gold-score accumulator
        ],
    )
    out = pl.pallas_call(
        crf_loss_kernel,
        out_shape=jax.ShapeDtypeStruct((Bp, 1), jnp.float32),
        grid_spec=grid_spec,
        compiler_params=_compiler_params(),
    )(maxlen, x_lbh, tags_lb1, seqlen_b1, gold0_p, w_pad, b_pad, exp_trans, tmax,
      start_pad, end_pad)
    return out[:B, 0]


# ----------------------------------------------------------------------------
# Kernel 2: constrained Viterbi (fused fc + chunked max-plus DP + in-kernel back-trace)
#   back-pointers live only in VMEM (int8); outputs are (B, L) decoded tags + (B, 1) best score
# ----------------------------------------------------------------------------
def viterbi_kernel(maxlen_ref, x_ref, seqlen_ref, w_ref, b_ref, transT_ref, start_ref, end_ref,
                   ans_ref, score_ref, emit_ref, vscore_ref, vpath_ref):
    Lt, bt, _ = x_ref.shape
    Cpad = transT_ref.shape[0]
    Lp = vpath_ref.shape[0]
    b_idx = pl.program_id(0)
    t_idx = pl.program_id(1)
    nt = pl.num_programs(1)
    t_start = t_idx * Lt

    seqlen = seqlen_ref[...]                 # (bt, 1) int32
    start_t = start_ref[...]
    end_t = end_ref[...]
    iota_c = lax.broadcasted_iota(jnp.int32, (bt, Cpad), 1)

    @pl.when(t_start < maxlen_ref[b_idx])            # skip fully-masked time chunks
    def _():
        w = w_ref[...]
        bvec = b_ref[...]
        transT = transT_ref[...]                     # (Cpad, Cpad), transT[j, i] = trans[i, j]

        def emit_body(lt, c):
            emit_ref[lt] = (jnp.dot(x_ref[lt], w, preferred_element_type=jnp.float32) + bvec)
            return c
        lax.fori_loop(0, Lt, emit_body, 0)

        @pl.when(t_idx == 0)
        def _():
            v0 = emit_ref[0] + start_t
            vscore_ref[...] = v0 + jnp.where(seqlen == 1, end_t, 0.0)   # length-1 sequences

        iota_jc = lax.broadcasted_iota(jnp.int32, (bt, _JC, Cpad), 2)

        def step(lt, c):
            gt = t_start + lt
            vscore = vscore_ref[...]                 # (bt, Cpad)
            emit = emit_ref[lt]
            m_t = gt < seqlen                        # (bt, 1) prefix mask from lengths
            end_add = jnp.where(seqlen == gt + 1, end_t, 0.0)           # (bt, Cpad)

            # max-plus over previous class i, processed in 8-row target-class (j) chunks so the
            # live intermediate is (bt, 8, Cpad) instead of a spilling (bt, Cpad, Cpad) tensor
            best_parts, arg_parts = [], []
            for j0 in range(0, Cpad, _JC):
                s = vscore[:, None, :] + transT[j0:j0 + _JC, :][None, :, :]   # (bt, _JC, Cpad)
                bmax = jnp.max(s, axis=-1)                                    # (bt, _JC)
                amin = jnp.min(jnp.where(s == bmax[..., None], iota_jc, Cpad),
                               axis=-1)                                       # lowest index wins
                best_parts.append(bmax)
                arg_parts.append(amin)
            best = jnp.concatenate(best_parts, axis=1)                        # (bt, Cpad)
            arg = jnp.concatenate(arg_parts, axis=1)                          # (bt, Cpad) int32

            vpath_ref[gt] = arg.astype(jnp.int8)     # back-pointers: int8, never leave VMEM
            cand = best + emit + end_add
            # masked steps keep the old score; their back-pointers never reach valid tokens
            vscore_ref[...] = jnp.where(m_t, cand, vscore)
            return c

        lt0 = jnp.where(t_idx == 0, 1, 0)
        lax.fori_loop(lt0, Lt, step, 0)

    @pl.when(t_idx == nt - 1)
    def _():
        vscore = vscore_ref[...]
        fmax = jnp.max(vscore, axis=-1, keepdims=True)                        # (bt, 1)
        last_tag = jnp.min(jnp.where(vscore == fmax, iota_c, Cpad),
                           axis=-1, keepdims=True)                            # (bt, 1) int32
        score_ref[...] = fmax
        iota_l = lax.broadcasted_iota(jnp.int32, ans_ref.shape, 1)            # (bt, Lp)

        # back-trace: walk absolute time Lp-1 .. 0, restarting at each sequence's end; decoded
        # tags stay in a register-resident carry and the output is stored exactly once.
        def walk(i, carry):
            cur_tag, dec = carry
            t = Lp - 1 - i
            row = vpath_ref[jnp.minimum(t + 1, Lp - 1)].astype(jnp.int32)     # (bt, Cpad)
            cur_oh = iota_c == cur_tag
            path_tag = jnp.sum(jnp.where(cur_oh, row, 0), axis=-1, keepdims=True)
            new_tag = jnp.where(seqlen == t + 1, last_tag, path_tag)
            dec = jnp.where(iota_l == t, new_tag, dec)
            return new_tag, dec

        _, dec = lax.fori_loop(0, Lp, walk,
                               (last_tag, jnp.zeros(ans_ref.shape, jnp.int32)))
        ans_ref[...] = dec


def viterbi_decode(inputs, mask, fc_w, fc_b, trans_m, start_scores, end_scores, constrain):
    B, L, H = inputs.shape
    C = fc_w.shape[0]
    Cpad = _round_up(max(C, _LANE), _LANE)
    Bp = _round_up(B, 8)
    bt = _batch_tile(Bp)
    Lt, Lp = _time_tiling(L)
    nb, nt = Bp // bt, Lp // Lt

    # fastNLP: constrained transition table with start row / end column folded in
    transitions = constrain.astype(jnp.float32)
    transitions = transitions.at[:C, :C].add(trans_m.astype(jnp.float32))
    transitions = transitions.at[C, :C].add(start_scores.astype(jnp.float32))
    transitions = transitions.at[:C, C + 1].add(end_scores.astype(jnp.float32))
    trans = transitions[:C, :C]
    start_t = transitions[C, :C]
    end_t = transitions[:C, C + 1]

    trans_pad = jnp.full((Cpad, Cpad), NEG, jnp.float32).at[:C, :C].set(trans)
    transT_pad = jnp.transpose(trans_pad)
    start_pad = jnp.full((1, Cpad), NEG, jnp.float32).at[0, :C].set(start_t)
    end_pad = jnp.full((1, Cpad), NEG, jnp.float32).at[0, :C].set(end_t)
    w_pad, b_pad = _pad_fc(fc_w, fc_b, Cpad)

    x_pad = jnp.pad(inputs.astype(jnp.float32), ((0, Bp - B), (0, Lp - L), (0, 0)))
    x_lbh = jnp.transpose(x_pad, (1, 0, 2)).astype(jnp.bfloat16)              # (Lp, Bp, H)
    seq_len = jnp.sum(mask.astype(jnp.float32), axis=1).astype(jnp.int32)
    seq_len_p = jnp.pad(seq_len, (0, Bp - B))
    seqlen_b1 = seq_len_p.reshape(Bp, 1)
    maxlen = seq_len_p.reshape(nb, bt).max(axis=1).astype(jnp.int32)

    grid_spec = pltpu.PrefetchScalarGridSpec(
        num_scalar_prefetch=1,
        grid=(nb, nt),
        in_specs=[
            pl.BlockSpec((Lt, bt, H), lambda b, t, ml: (t, b, 0)),
            pl.BlockSpec((bt, 1), lambda b, t, ml: (b, 0)),
            pl.BlockSpec((H, Cpad), lambda b, t, ml: (0, 0)),
            pl.BlockSpec((1, Cpad), lambda b, t, ml: (0, 0)),
            pl.BlockSpec((Cpad, Cpad), lambda b, t, ml: (0, 0)),
            pl.BlockSpec((1, Cpad), lambda b, t, ml: (0, 0)),
            pl.BlockSpec((1, Cpad), lambda b, t, ml: (0, 0)),
        ],
        out_specs=(pl.BlockSpec((bt, Lp), lambda b, t, ml: (b, 0)),
                   pl.BlockSpec((bt, 1), lambda b, t, ml: (b, 0))),
        scratch_shapes=[
            pltpu.VMEM((Lt, bt, Cpad), jnp.float32),   # chunk emissions
            pltpu.VMEM((bt, Cpad), jnp.float32),       # vscore (carried across time chunks)
            pltpu.VMEM((Lp, bt, Cpad), jnp.int8),      # back-pointers (int8, VMEM only)
        ],
    )
    ans, score = pl.pallas_call(
        viterbi_kernel,
        out_shape=(jax.ShapeDtypeStruct((Bp, Lp), jnp.int32),
                   jax.ShapeDtypeStruct((Bp, 1), jnp.float32)),
        grid_spec=grid_spec,
        compiler_params=_compiler_params(),
    )(maxlen, x_lbh, seqlen_b1, w_pad, b_pad, transT_pad, start_pad, end_pad)
    return ans[:B, :L], score[:B, 0]


# ----------------------------------------------------------------------------
# Module wrapper (mirrors CRFSeqLabeling.forward)
# ----------------------------------------------------------------------------
class CRFSeqLabelingPallas:
    def __init__(self, hidden_size, label_names, key):
        self.label_names = label_names
        self.num_labels = C = len(label_names)
        k_w, k_b, k_t, k_s, k_e = jax.random.split(key, 5)
        bound = 1.0 / float(np.sqrt(hidden_size))
        self.fc_w = jax.random.uniform(k_w, (C, hidden_size), jnp.float32, -bound, bound)
        self.fc_b = jax.random.uniform(k_b, (C,), jnp.float32, -bound, bound)
        self.trans_m = jax.random.normal(k_t, (C, C), jnp.float32)
        self.start_scores = jax.random.normal(k_s, (C,), jnp.float32)
        self.end_scores = jax.random.normal(k_e, (C,), jnp.float32)
        self._constrain = jnp.asarray(build_constraint(label_names))     # (C+2, C+2)

    def __call__(self, inputs, labels=None, mask=None):
        B, L, _ = inputs.shape
        if mask is None:
            mask = jnp.ones((B, L), jnp.float32)
        if labels is None:
            pred_labels, _ = viterbi_decode(
                inputs, mask, self.fc_w, self.fc_b, self.trans_m,
                self.start_scores, self.end_scores, self._constrain)
            return pred_labels
        nll = crf_nll(inputs, labels, mask, self.fc_w, self.fc_b, self.trans_m,
                      self.start_scores, self.end_scores)
        return jnp.mean(nll)


if __name__ == "__main__":
    key = jax.random.PRNGKey(0)
    label_names = ["O", "B-PER", "I-PER", "B-LOC", "I-LOC"]
    # seq long enough to exercise the time-chunked grid (Lt=128 -> 2 time chunks)
    B, L, H = 2, 256, 32
    C = len(label_names)

    k_model, k_x, k_tags = jax.random.split(key, 3)
    model = CRFSeqLabelingPallas(H, label_names, k_model)

    inputs = jax.random.normal(k_x, (B, L, H), jnp.float32)
    lens = jnp.array([L, 100], jnp.int32)
    mask = (jnp.arange(L)[None, :] < lens[:, None]).astype(jnp.float32)   # (B, L) prefix mask
    tags = jax.random.randint(k_tags, (B, L), 0, C).astype(jnp.int32)

    loss = model(inputs, labels=tags, mask=mask)        # training path  -> scalar CRF NLL
    preds = model(inputs, labels=None, mask=mask)       # inference path -> (B, L) Viterbi labels

    jax.block_until_ready(loss)
    jax.block_until_ready(preds)

    assert bool(jnp.isfinite(loss)), "loss is not finite"
    assert preds.shape == (B, L), f"bad preds shape {preds.shape}"
    valid = np.asarray(mask) > 0.5
    assert int(np.asarray(preds)[valid].max()) < C, "decoded tag out of label range"
    print("KERNEL_OK")
</pallas_src>

<mosaic_0001>
module attributes {stable_mosaic.version = 11 : i64} {
  func.func @crf_loss_kernel(%arg0: i32, %arg1: i32, %arg2: memref<1xi32, #tpu.memory_space<smem>>, %arg3: memref<128x8x32xbf16, #tpu.memory_space<vmem>>, %arg4: memref<128x8x1xi32, #tpu.memory_space<vmem>>, %arg5: memref<8x1xi32, #tpu.memory_space<vmem>>, %arg6: memref<8x1xf32, #tpu.memory_space<vmem>>, %arg7: memref<32x128xbf16, #tpu.memory_space<vmem>>, %arg8: memref<1x128xf32, #tpu.memory_space<vmem>>, %arg9: memref<128x128xf32, #tpu.memory_space<vmem>>, %arg10: memref<1x128xf32, #tpu.memory_space<vmem>>, %arg11: memref<1x128xf32, #tpu.memory_space<vmem>>, %arg12: memref<1x128xf32, #tpu.memory_space<vmem>>, %arg13: memref<8x1xf32, #tpu.memory_space<vmem>>, %arg14: memref<128x8x128xf32, #tpu.memory_space<vmem>>, %arg15: memref<8x128xf32, #tpu.memory_space<vmem>>, %arg16: memref<8x1xf32, #tpu.memory_space<vmem>>) attributes {dimension_semantics = [#tpu.dimension_semantics<parallel>, #tpu.dimension_semantics<arbitrary>], iteration_bounds = array<i64: 1, 2>, scalar_prefetch = 1 : i64, scratch_operands = 3 : i64, tpu.core_type = #tpu.core_type<tc>, window_params = [{transform_indices = @transform_0, window_bounds = array<i64: 128, 8, 32>}, {transform_indices = @transform_1, window_bounds = array<i64: 128, 8, 1>}, {transform_indices = @transform_2, window_bounds = array<i64: 8, 1>}, {transform_indices = @transform_3, window_bounds = array<i64: 8, 1>}, {pipeline_mode = #tpu.pipeline_mode<synchronous>, transform_indices = @transform_4, window_bounds = array<i64: 32, 128>}, {pipeline_mode = #tpu.pipeline_mode<synchronous>, transform_indices = @transform_5, window_bounds = array<i64: 1, 128>}, {pipeline_mode = #tpu.pipeline_mode<synchronous>, transform_indices = @transform_6, window_bounds = array<i64: 128, 128>}, {pipeline_mode = #tpu.pipeline_mode<synchronous>, transform_indices = @transform_7, window_bounds = array<i64: 1, 128>}, {pipeline_mode = #tpu.pipeline_mode<synchronous>, transform_indices = @transform_8, window_bounds = array<i64: 1, 128>}, {pipeline_mode = #tpu.pipeline_mode<synchronous>, transform_indices = @transform_9, window_bounds = array<i64: 1, 128>}, {transform_indices = @transform_10, window_bounds = array<i64: 8, 1>}]} {
    %c128_i32 = arith.constant 128 : i32
    %0 = arith.muli %arg1, %c128_i32 : i32
    %c0 = arith.constant 0 : index
    %c0_0 = arith.constant 0 : index
    %1 = vector.load %arg5[%c0, %c0_0] : memref<8x1xi32, #tpu.memory_space<vmem>>, vector<8x1xi32>
    %c0_1 = arith.constant 0 : index
    %c0_2 = arith.constant 0 : index
    %2 = vector.load %arg10[%c0_1, %c0_2] : memref<1x128xf32, #tpu.memory_space<vmem>>, vector<1x128xf32>
    %c0_3 = arith.constant 0 : index
    %c0_4 = arith.constant 0 : index
    %3 = vector.load %arg11[%c0_3, %c0_4] : memref<1x128xf32, #tpu.memory_space<vmem>>, vector<1x128xf32>
    %c0_5 = arith.constant 0 : index
    %c0_6 = arith.constant 0 : index
    %4 = vector.load %arg12[%c0_5, %c0_6] : memref<1x128xf32, #tpu.memory_space<vmem>>, vector<1x128xf32>
    %5 = tpu.iota {dimensions = array<i32: 1>} : vector<8x128xi32>
    %6 = arith.index_cast %arg0 : i32 to index
    %7 = memref.load %arg2[%6] : memref<1xi32, #tpu.memory_space<smem>>
    %8 = arith.cmpi slt, %0, %7 : i32
    %9 = arith.extui %8 : i1 to i32
    %c0_i32 = arith.constant 0 : i32
    %10 = arith.cmpi ne, %9, %c0_i32 : i32
    scf.if %10 {
      %c0_8 = arith.constant 0 : index
      %c0_9 = arith.constant 0 : index
      %14 = vector.load %arg7[%c0_8, %c0_9] : memref<32x128xbf16, #tpu.memory_space<vmem>>, vector<32x128xbf16>
      %c0_10 = arith.constant 0 : index
      %c0_11 = arith.constant 0 : index
      %15 = vector.load %arg8[%c0_10, %c0_11] : memref<1x128xf32, #tpu.memory_space<vmem>>, vector<1x128xf32>
      %c0_12 = arith.constant 0 : index
      %c0_13 = arith.constant 0 : index
      %16 = vector.load %arg9[%c0_12, %c0_13] : memref<128x128xf32, #tpu.memory_space<vmem>>, vector<128x128xf32>
      %c0_i32_14 = arith.constant 0 : i32
      %c128_i32_15 = arith.constant 128 : i32
      %17 = arith.addi %c0_i32_14, %c128_i32_15 : i32
      %c1_i32_16 = arith.constant 1 : i32
      scf.for %arg17 = %c0_i32_14 to %17 step %c1_i32_16  : i32 {
        %25 = arith.index_cast %arg17 : i32 to index
        %c0_26 = arith.constant 0 : index
        %c0_27 = arith.constant 0 : index
        %26 = vector.load %arg3[%25, %c0_26, %c0_27] : memref<128x8x32xbf16, #tpu.memory_space<vmem>>, vector<1x8x32xbf16>
        %27 = vector.shape_cast %26 : vector<1x8x32xbf16> to vector<8x32xbf16>
        %cst = arith.constant dense<0.000000e+00> : vector<8x128xf32>
        %28 = tpu.matmul %27, %14, %cst {dimension_numbers = #tpu.dot_dimension_numbers<[1], [0], [0], [1], [0, 0, 1, 1], [], []>} : vector<8x32xbf16>, vector<32x128xbf16>, vector<8x128xf32> -> vector<8x128xf32>
        %29 = vector.broadcast %15 : vector<1x128xf32> to vector<8x128xf32>
        %30 = arith.addf %28, %29 : vector<8x128xf32>
        %31 = arith.index_cast %arg17 : i32 to index
        %c0_28 = arith.constant 0 : index
        %c0_29 = arith.constant 0 : index
        %32 = vector.load %arg14[%31, %c0_28, %c0_29] : memref<128x8x128xf32, #tpu.memory_space<vmem>>, vector<1x8x128xf32>
        %33 = vector.shape_cast %32 : vector<1x8x128xf32> to vector<8x128xf32>
        %34 = vector.shape_cast %30 : vector<8x128xf32> to vector<1x8x128xf32>
        tpu.vector_store %arg14[%31, %c0_28, %c0_29], %34 {strides = array<i32>} : memref<128x8x128xf32, #tpu.memory_space<vmem>>, vector<1x8x128xf32>,
      }
      %c128_i32_17 = arith.constant 128 : i32
      %c0_i32_18 = arith.constant 0 : i32
      %18 = arith.cmpi eq, %arg1, %c0_i32_18 : i32
      %19 = arith.extui %18 : i1 to i32
      %c0_i32_19 = arith.constant 0 : i32
      %20 = arith.cmpi ne, %19, %c0_i32_19 : i32
      scf.if %20 {
        %c0_26 = arith.constant 0 : index
        %c0_27 = arith.constant 0 : index
        %c0_28 = arith.constant 0 : index
        %25 = vector.load %arg14[%c0_26, %c0_27, %c0_28] : memref<128x8x128xf32, #tpu.memory_space<vmem>>, vector<1x8x128xf32>
        %26 = vector.shape_cast %25 : vector<1x8x128xf32> to vector<8x128xf32>
        %c0_29 = arith.constant 0 : index
        %c0_30 = arith.constant 0 : index
        %c0_31 = arith.constant 0 : index
        %27 = vector.load %arg4[%c0_29, %c0_30, %c0_31] : memref<128x8x1xi32, #tpu.memory_space<vmem>>, vector<1x8x1xi32>
        %28 = vector.shape_cast %27 : vector<1x8x1xi32> to vector<8x1xi32>
        %29 = vector.broadcast %28 : vector<8x1xi32> to vector<8x128xi32>
        %30 = arith.cmpi eq, %5, %29 : vector<8x128xi32>
        %31 = arith.extui %30 : vector<8x128xi1> to vector<8x128xi32>
        %32 = arith.sitofp %31 : vector<8x128xi32> to vector<8x128xf32>
        %33 = vector.broadcast %3 : vector<1x128xf32> to vector<8x128xf32>
        %34 = arith.addf %26, %33 : vector<8x128xf32>
        %c0_32 = arith.constant 0 : index
        %c0_33 = arith.constant 0 : index
        %35 = vector.load %arg15[%c0_32, %c0_33] : memref<8x128xf32, #tpu.memory_space<vmem>>, vector<8x128xf32>
        tpu.vector_store %arg15[%c0_32, %c0_33], %34 {strides = array<i32>} : memref<8x128xf32, #tpu.memory_space<vmem>>, vector<8x128xf32>,
        %36 = arith.mulf %26, %32 : vector<8x128xf32>
        %cst = arith.constant dense<0.000000e+00> : vector<8xf32>
        %37 = vector.multi_reduction <add>, %36, %cst [1] : vector<8x128xf32> to vector<8xf32>
        %38 = vector.shape_cast %37 : vector<8xf32> to vector<8x1xf32>
        %c0_34 = arith.constant 0 : index
        %c0_35 = arith.constant 0 : index
        %39 = vector.load %arg6[%c0_34, %c0_35] : memref<8x1xf32, #tpu.memory_space<vmem>>, vector<8x1xf32>
        %c0_i32_36 = arith.constant 0 : i32
        %40 = vector.broadcast %c0_i32_36 : i32 to vector<8x1xi32>
        %41 = arith.cmpi sgt, %1, %40 : vector<8x1xi32>
        %cst_37 = arith.constant 0.000000e+00 : f32
        %42 = vector.broadcast %cst_37 : f32 to vector<8x1xf32>
        %43 = arith.select %41, %38, %42 : vector<8x1xi1>, vector<8x1xf32>
        %44 = arith.addf %39, %43 : vector<8x1xf32>
        %c0_38 = arith.constant 0 : index
        %c0_39 = arith.constant 0 : index
        %45 = vector.load %arg16[%c0_38, %c0_39] : memref<8x1xf32, #tpu.memory_space<vmem>>, vector<8x1xf32>
        tpu.vector_store %arg16[%c0_38, %c0_39], %44 {strides = array<i32>} : memref<8x1xf32, #tpu.memory_space<vmem>>, vector<8x1xf32>,
      } else {
      }
      %c0_i32_20 = arith.constant 0 : i32
      %21 = arith.cmpi eq, %arg1, %c0_i32_20 : i32
      %c1_i32_21 = arith.constant 1 : i32
      %c0_i32_22 = arith.constant 0 : i32
      %22 = arith.select %21, %c1_i32_21, %c0_i32_22 : i32
      %c0_i32_23 = arith.constant 0 : i32
      %c128_i32_24 = arith.constant 128 : i32
      %23 = arith.subi %c128_i32_24, %22 : i32
      %24 = arith.addi %22, %23 : i32
      %c1_i32_25 = arith.constant 1 : i32
      scf.for %arg17 = %22 to %24 step %c1_i32_25  : i32 {
        %25 = arith.addi %0, %arg17 : i32
        %c0_26 = arith.constant 0 : index
        %c0_27 = arith.constant 0 : index
        %26 = vector.load %arg15[%c0_26, %c0_27] : memref<8x128xf32, #tpu.memory_space<vmem>>, vector<8x128xf32>
        %27 = arith.index_cast %arg17 : i32 to index
        %c0_28 = arith.constant 0 : index
        %c0_29 = arith.constant 0 : index
        %28 = vector.load %arg14[%27, %c0_28, %c0_29] : memref<128x8x128xf32, #tpu.memory_space<vmem>>, vector<1x8x128xf32>
        %29 = vector.shape_cast %28 : vector<1x8x128xf32> to vector<8x128xf32>
        %30 = vector.broadcast %25 : i32 to vector<8x1xi32>
        %31 = arith.cmpi slt, %30, %1 : vector<8x1xi32>
        %cst = arith.constant dense<0xFF800000> : vector<8xf32>
        %32 = vector.multi_reduction <maximumf>, %26, %cst [1] : vector<8x128xf32> to vector<8xf32>
        %33 = vector.shape_cast %32 : vector<8xf32> to vector<8x1xf32>
        %34 = vector.broadcast %33 : vector<8x1xf32> to vector<8x128xf32>
        %35 = arith.subf %26, %34 : vector<8x128xf32>
        %36 = math.exp %35 : vector<8x128xf32>
        %cst_30 = arith.constant dense<0.000000e+00> : vector<8x128xf32>
        %37 = tpu.matmul %36, %16, %cst_30 {dimension_numbers = #tpu.dot_dimension_numbers<[1], [0], [0], [1], [0, 0, 1, 1], [], []>} : vector<8x128xf32>, vector<128x128xf32>, vector<8x128xf32> -> vector<8x128xf32>
        %38 = vector.broadcast %33 : vector<8x1xf32> to vector<8x128xf32>
        %39 = arith.addf %29, %38 : vector<8x128xf32>
        %40 = vector.broadcast %2 : vector<1x128xf32> to vector<8x128xf32>
        %41 = arith.addf %39, %40 : vector<8x128xf32>
        %cst_31 = arith.constant 9.99999991E-38 : f32
        %42 = vector.broadcast %cst_31 : f32 to vector<8x128xf32>
        %43 = arith.maximumf %37, %42 : vector<8x128xf32>
        %44 = math.log %43 : vector<8x128xf32>
        %45 = arith.addf %41, %44 : vector<8x128xf32>
        %46 = vector.shape_cast %31 : vector<8x1xi1> to vector<8x1xi1>
        %47 = vector.broadcast %46 : vector<8x1xi1> to vector<8x128xi1>
        %48 = arith.select %47, %45, %26 : vector<8x128xi1>, vector<8x128xf32>
        %c0_32 = arith.constant 0 : index
        %c0_33 = arith.constant 0 : index
        %49 = vector.load %arg15[%c0_32, %c0_33] : memref<8x128xf32, #tpu.memory_space<vmem>>, vector<8x128xf32>
        tpu.vector_store %arg15[%c0_32, %c0_33], %48 {strides = array<i32>} : memref<8x128xf32, #tpu.memory_space<vmem>>, vector<8x128xf32>,
        %50 = arith.index_cast %arg17 : i32 to index
        %c0_34 = arith.constant 0 : index
        %c0_35 = arith.constant 0 : index
        %51 = vector.load %arg4[%50, %c0_34, %c0_35] : memref<128x8x1xi32, #tpu.memory_space<vmem>>, vector<1x8x1xi32>
        %52 = vector.shape_cast %51 : vector<1x8x1xi32> to vector<8x1xi32>
        %53 = vector.broadcast %52 : vector<8x1xi32> to vector<8x128xi32>
        %54 = arith.cmpi eq, %5, %53 : vector<8x128xi32>
        %55 = arith.extui %54 : vector<8x128xi1> to vector<8x128xi32>
        %56 = arith.sitofp %55 : vector<8x128xi32> to vector<8x128xf32>
        %57 = arith.mulf %29, %56 : vector<8x128xf32>
        %cst_36 = arith.constant dense<0.000000e+00> : vector<8xf32>
        %58 = vector.multi_reduction <add>, %57, %cst_36 [1] : vector<8x128xf32> to vector<8xf32>
        %59 = vector.shape_cast %58 : vector<8xf32> to vector<8x1xf32>
        %c0_37 = arith.constant 0 : index
        %c0_38 = arith.constant 0 : index
        %60 = vector.load %arg16[%c0_37, %c0_38] : memref<8x1xf32, #tpu.memory_space<vmem>>, vector<8x1xf32>
        %cst_39 = arith.constant 0.000000e+00 : f32
        %61 = vector.broadcast %cst_39 : f32 to vector<8x1xf32>
        %62 = arith.select %31, %59, %61 : vector<8x1xi1>, vector<8x1xf32>
        %63 = arith.addf %60, %62 : vector<8x1xf32>
        %c0_40 = arith.constant 0 : index
        %c0_41 = arith.constant 0 : index
        %64 = vector.load %arg16[%c0_40, %c0_41] : memref<8x1xf32, #tpu.memory_space<vmem>>, vector<8x1xf32>
        tpu.vector_store %arg16[%c0_40, %c0_41], %63 {strides = array<i32>} : memref<8x1xf32, #tpu.memory_space<vmem>>, vector<8x1xf32>,
      }
    } else {
    }
    %c1_i32 = arith.constant 1 : i32
    %11 = arith.cmpi eq, %arg1, %c1_i32 : i32
    %12 = arith.extui %11 : i1 to i32
    %c0_i32_7 = arith.constant 0 : i32
    %13 = arith.cmpi ne, %12, %c0_i32_7 : i32
    scf.if %13 {
      %c0_8 = arith.constant 0 : index
      %c0_9 = arith.constant 0 : index
      %14 = vector.load %arg15[%c0_8, %c0_9] : memref<8x128xf32, #tpu.memory_space<vmem>>, vector<8x128xf32>
      %15 = vector.broadcast %4 : vector<1x128xf32> to vector<8x128xf32>
      %16 = arith.addf %14, %15 : vector<8x128xf32>
      %cst = arith.constant dense<0xFF800000> : vector<8xf32>
      %17 = vector.multi_reduction <maximumf>, %16, %cst [1] : vector<8x128xf32> to vector<8xf32>
      %18 = vector.shape_cast %17 : vector<8xf32> to vector<8x1xf32>
      %19 = vector.broadcast %18 : vector<8x1xf32> to vector<8x128xf32>
      %20 = arith.subf %16, %19 : vector<8x128xf32>
      %21 = math.exp %20 : vector<8x128xf32>
      %cst_10 = arith.constant dense<0.000000e+00> : vector<8xf32>
      %22 = vector.multi_reduction <add>, %21, %cst_10 [1] : vector<8x128xf32> to vector<8xf32>
      %23 = vector.shape_cast %22 : vector<8xf32> to vector<8x1xf32>
      %24 = math.log %23 : vector<8x1xf32>
      %25 = arith.addf %24, %18 : vector<8x1xf32>
      %c0_11 = arith.constant 0 : index
      %c0_12 = arith.constant 0 : index
      %26 = vector.load %arg16[%c0_11, %c0_12] : memref<8x1xf32, #tpu.memory_space<vmem>>, vector<8x1xf32>
      %27 = arith.subf %25, %26 : vector<8x1xf32>
      %c0_13 = arith.constant 0 : index
      %c0_14 = arith.constant 0 : index
      %28 = vector.load %arg13[%c0_13, %c0_14] : memref<8x1xf32, #tpu.memory_space<vmem>>, vector<8x1xf32>
      tpu.vector_store %arg13[%c0_13, %c0_14], %27 {strides = array<i32>} : memref<8x1xf32, #tpu.memory_space<vmem>>, vector<8x1xf32>,
    } else {
    }
    return
  }
  func.func @transform_0(%arg0: i32, %arg1: i32, %arg2: memref<1xi32, #tpu.memory_space<smem>>) -> (i32, i32, i32) {
    %c0_i32 = arith.constant 0 : i32
    %c0_i32_0 = arith.constant 0 : i32
    return %arg1, %arg0, %c0_i32 : i32, i32, i32
  }
  func.func @transform_1(%arg0: i32, %arg1: i32, %arg2: memref<1xi32, #tpu.memory_space<smem>>) -> (i32, i32, i32) {
    %c0_i32 = arith.constant 0 : i32
    %c0_i32_0 = arith.constant 0 : i32
    return %arg1, %arg0, %c0_i32 : i32, i32, i32
  }
  func.func @transform_2(%arg0: i32, %arg1: i32, %arg2: memref<1xi32, #tpu.memory_space<smem>>) -> (i32, i32) {
    %c0_i32 = arith.constant 0 : i32
    %c0_i32_0 = arith.constant 0 : i32
    return %arg0, %c0_i32 : i32, i32
  }
  func.func @transform_3(%arg0: i32, %arg1: i32, %arg2: memref<1xi32, #tpu.memory_space<smem>>) -> (i32, i32) {
    %c0_i32 = arith.constant 0 : i32
    %c0_i32_0 = arith.constant 0 : i32
    return %arg0, %c0_i32 : i32, i32
  }
  func.func @transform_4(%arg0: i32, %arg1: i32, %arg2: memref<1xi32, #tpu.memory_space<smem>>) -> (i32, i32) {
    %c0_i32 = arith.constant 0 : i32
    %c0_i32_0 = arith.constant 0 : i32
    %c0_i32_1 = arith.constant 0 : i32
    return %c0_i32, %c0_i32_0 : i32, i32
  }
  func.func @transform_5(%arg0: i32, %arg1: i32, %arg2: memref<1xi32, #tpu.memory_space<smem>>) -> (i32, i32) {
    %c0_i32 = arith.constant 0 : i32
    %c0_i32_0 = arith.constant 0 : i32
    %c0_i32_1 = arith.constant 0 : i32
    return %c0_i32, %c0_i32_0 : i32, i32
  }
  func.func @transform_6(%arg0: i32, %arg1: i32, %arg2: memref<1xi32, #tpu.memory_space<smem>>) -> (i32, i32) {
    %c0_i32 = arith.constant 0 : i32
    %c0_i32_0 = arith.constant 0 : i32
    %c0_i32_1 = arith.constant 0 : i32
    return %c0_i32, %c0_i32_0 : i32, i32
  }
  func.func @transform_7(%arg0: i32, %arg1: i32, %arg2: memref<1xi32, #tpu.memory_space<smem>>) -> (i32, i32) {
    %c0_i32 = arith.constant 0 : i32
    %c0_i32_0 = arith.constant 0 : i32
    %c0_i32_1 = arith.constant 0 : i32
    return %c0_i32, %c0_i32_0 : i32, i32
  }
  func.func @transform_8(%arg0: i32, %arg1: i32, %arg2: memref<1xi32, #tpu.memory_space<smem>>) -> (i32, i32) {
    %c0_i32 = arith.constant 0 : i32
    %c0_i32_0 = arith.constant 0 : i32
    %c0_i32_1 = arith.constant 0 : i32
    return %c0_i32, %c0_i32_0 : i32, i32
  }
  func.func @transform_9(%arg0: i32, %arg1: i32, %arg2: memref<1xi32, #tpu.memory_space<smem>>) -> (i32, i32) {
    %c0_i32 = arith.constant 0 : i32
    %c0_i32_0 = arith.constant 0 : i32
    %c0_i32_1 = arith.constant 0 : i32
    return %c0_i32, %c0_i32_0 : i32, i32
  }
  func.func @transform_10(%arg0: i32, %arg1: i32, %arg2: memref<1xi32, #tpu.memory_space<smem>>) -> (i32, i32) {
    %c0_i32 = arith.constant 0 : i32
    %c0_i32_0 = arith.constant 0 : i32
    return %arg0, %c0_i32 : i32, i32
  }
}

</mosaic_0001>

<llo_original>
// kernel: tpu_custom_call.1
$region0: #{tpu_custom_call.1}
  #allocation0 [shape = 'u32[]', space=smem, size = 0x4, offset = 0x4, fixed_abs, tag = 'smem constant byte address 0x4 - core index']
  #allocation1 [shape = 'u32[72,128]{1,0:T(1,128)}', space=vmem, size = 0x9000, scoped, tag = 'internal scratch']
  #allocation2 [shape = 'f32[128,8,128]{2,1,0:T(8,128)}', space=vmem, size = 0x80000, scoped, tag = 'scratch operand']
  #allocation3 [shape = 'f32[8,128]{1,0:T(8,128)}', space=vmem, size = 0x1000, scoped, tag = 'scratch operand']
  #allocation4 [shape = 'f32[8,1]{1,0:T(8,128)}', space=vmem, size = 0x1000, scoped, tag = 'scratch operand']
  #allocation5 [shape = 's32[1]{0}', space=sflag, size = 0x4, scoped, tag = 'scoped memory for tpu_custom_call.1']
  #allocation6 [shape = 's32[1]{0:T(128)S(6)}', space=smem, size = 0x200, scoped, tag = 'prefetched SMEM operand 0']
  %s0 = inlined_call_operand.<no memory space> [shape: s32[1], index: 0, kind: input, shape index: {}]
  %s1 = inlined_call_operand.vmem [shape: bf16[256,8,32], index: 1, kind: input, shape index: {}]
  %s2 = inlined_call_operand.vmem [shape: s32[256,8,1], index: 2, kind: input, shape index: {}]
  %s3 = inlined_call_operand.vmem [shape: s32[8,1], index: 3, kind: input, shape index: {}]
  %s4 = inlined_call_operand.vmem [shape: f32[8,1], index: 4, kind: input, shape index: {}]
  %s5 = inlined_call_operand.vmem [shape: bf16[32,128], index: 5, kind: input, shape index: {}]
  %s6 = inlined_call_operand.vmem [shape: f32[1,128], index: 6, kind: input, shape index: {}]
  %s7 = inlined_call_operand.vmem [shape: f32[128,128], index: 7, kind: input, shape index: {}]
  %s8 = inlined_call_operand.vmem [shape: f32[1,128], index: 8, kind: input, shape index: {}]
  %s9 = inlined_call_operand.vmem [shape: f32[1,128], index: 9, kind: input, shape index: {}]
  %s10 = inlined_call_operand.vmem [shape: f32[1,128], index: 10, kind: input, shape index: {}]
  %s11 = inlined_call_operand.vmem [shape: f32[8,1], index: 11, kind: output, shape index: {}]
  %s12 = sld [smem:[#allocation0]]
  $region99: #{tpu_custom_call.1} parent=0
    _
  %s14 = ssub.s32 1, %s12
  %s15 = scalar_select 0, %s14, %s12
  %16 = sst [smem:[#allocation6]] %s0
  loop: start=0, step=1, limit=4
  $region2: #{tpu_custom_call.1} parent=0 // loop_pre_header
    _
  $region3: #{tpu_custom_call.1} parent=0 // loop_header
    %s18 = sphi 0, %s22
    %p19 = scmp.ge.s32.totalorder %s18, 4
    %s25 = sphi 0, %s37
    %s26 = sphi 0, %s33
    %s27 = sphi 0, %s25
    %s28 = sphi 0, %s26
    %s29 = sphi 0, %s27
    %s30 = sphi 0, %s28
    %s42 = sphi 0, %s44
    %s45 = sphi 0, %s42
    %s46 = sphi 0, %s45
    %s62 = sphi 0, %s46
    %s70 = sphi 0, %s72
    %s73 = sphi 0, %s70
    %s74 = sphi 0, %s73
    %s90 = sphi 0, %s74
    %s96 = sphi 0, %s98
    %s99 = sphi 0, %s96
    %s100 = sphi 0, %s99
    %s116 = sphi 0, %s100
    %s122 = sphi 0, %s124
    %s125 = sphi 0, %s122
    %s126 = sphi 0, %s125
    %s142 = sphi 0, %s126
    %s146 = sphi 0, %s146
    %s148 = sphi 0, %s146
    %s149 = sphi 0, %s148
    %s163 = sphi 0, %s149
    %s167 = sphi 0, %s167
    %s169 = sphi 0, %s167
    %s170 = sphi 0, %s169
    %s184 = sphi 0, %s170
    %s188 = sphi 0, %s188
    %s190 = sphi 0, %s188
    %s191 = sphi 0, %s190
    %s205 = sphi 0, %s191
    %s209 = sphi 0, %s209
    %s211 = sphi 0, %s209
    %s212 = sphi 0, %s211
    %s226 = sphi 0, %s212
    %s230 = sphi 0, %s230
    %s232 = sphi 0, %s230
    %s233 = sphi 0, %s232
    %s247 = sphi 0, %s233
    %s251 = sphi 0, %s251
    %s253 = sphi 0, %s251
    %s254 = sphi 0, %s253
    %s268 = sphi 0, %s254
    %s274 = sphi 0, %s276
    %s277 = sphi 0, %s274
    %s278 = sphi 0, %s277
    %s294 = sphi 0, %s278
  $region4: #{tpu_custom_call.1} parent=0 // loop_header_branch
    %21 = sbr.rel (%p19) target = $region8
  $region5: #{tpu_custom_call.1} parent=0 // loop_body
    %s23 = ssub.s32 %s18, 1
    %s24 = ssub.s32 %s18, 2
    %s31 = sadd.s32 1, %s26
    %p32 = scmp.ge.s32.totalorder %s31, 2
    %s33 = scalar_select %p32, 0, %s31
    %s34 = sadd.s32 1, %s25
    %s35 = scalar_select %p32, %s34, %s25
    %p36 = scmp.ge.s32.totalorder %s35, 1
    %s37 = scalar_select %p36, 0, %s35
    %s38 = ssub.s32 %s26, %s33
    %s39 = ssub.s32 %s25, %s37
    %s40 = sor.u32 %s38, %s39
    %p41 = scmp.eq.s32.totalorder %s40, 0
    %s43 = sadd.s32 %s42, 1
    %s44 = scalar_select %p41, %s42, %s43
    %p47 = pneg %p41
    %p48 = scmp.eq.s32.totalorder %s18, 1
    %p49 = por %p47, %p48
    %p50 = scmp.ne.s32.totalorder %s42, %s45
    %p51 = scmp.eq.s32.totalorder %s18, 0
    %p52 = por %p50, %p51
    %p53 = scmp.ne.s32.totalorder %s42, %s45
    %p54 = scmp.eq.s32.totalorder %s23, 1
    %p55 = por %p53, %p54
    %p56 = scmp.ne.s32.totalorder %s45, %s46
    %p57 = scmp.eq.s32.totalorder %s23, 0
    %p58 = por %p56, %p57
    %p59 = scmp.ne.s32.totalorder %s45, %s46
    %p60 = scmp.eq.s32.totalorder %s24, 1
    %p61 = por %p59, %p60
    %p63 = scmp.ne.s32.totalorder %s46, %s62
    %p64 = scmp.eq.s32.totalorder %s24, 0
    %p65 = por %p63, %p64
    %s66 = ssub.s32 %s26, %s33
    %s67 = ssub.s32 %s25, %s37
    %s68 = sor.u32 %s66, %s67
    %p69 = scmp.eq.s32.totalorder %s68, 0
    %s71 = sadd.s32 %s70, 1
    %s72 = scalar_select %p69, %s70, %s71
    %p75 = pneg %p69
    %p76 = scmp.eq.s32.totalorder %s18, 1
    %p77 = por %p75, %p76
    %p78 = scmp.ne.s32.totalorder %s70, %s73
    %p79 = scmp.eq.s32.totalorder %s18, 0
    %p80 = por %p78, %p79
    %p81 = scmp.ne.s32.totalorder %s70, %s73
    %p82 = scmp.eq.s32.totalorder %s23, 1
    %p83 = por %p81, %p82
    %p84 = scmp.ne.s32.totalorder %s73, %s74
    %p85 = scmp.eq.s32.totalorder %s23, 0
    %p86 = por %p84, %p85
    %p87 = scmp.ne.s32.totalorder %s73, %s74
    %p88 = scmp.eq.s32.totalorder %s24, 1
    %p89 = por %p87, %p88
    %p91 = scmp.ne.s32.totalorder %s74, %s90
    %p92 = scmp.eq.s32.totalorder %s24, 0
    %p93 = por %p91, %p92
    %s94 = ssub.s32 %s25, %s37
    %p95 = scmp.eq.s32.totalorder %s94, 0
    %s97 = sadd.s32 %s96, 1
    %s98 = scalar_select %p95, %s96, %s97
    %p101 = pneg %p95
    %p102 = scmp.eq.s32.totalorder %s18, 1
    %p103 = por %p101, %p102
    %p104 = scmp.ne.s32.totalorder %s96, %s99
    %p105 = scmp.eq.s32.totalorder %s18, 0
    %p106 = por %p104, %p105
    %p107 = scmp.ne.s32.totalorder %s96, %s99
    %p108 = scmp.eq.s32.totalorder %s23, 1
    %p109 = por %p107, %p108
    %p110 = scmp.ne.s32.totalorder %s99, %s100
    %p111 = scmp.eq.s32.totalorder %s23, 0
    %p112 = por %p110, %p111
    %p113 = scmp.ne.s32.totalorder %s99, %s100
    %p114 = scmp.eq.s32.totalorder %s24, 1
    %p115 = por %p113, %p114
    %p117 = scmp.ne.s32.totalorder %s100, %s116
    %p118 = scmp.eq.s32.totalorder %s24, 0
    %p119 = por %p117, %p118
    %s120 = ssub.s32 %s25, %s37
    %p121 = scmp.eq.s32.totalorder %s120, 0
    %s123 = sadd.s32 %s122, 1
    %s124 = scalar_select %p121, %s122, %s123
    %p127 = pneg %p121
    %p128 = scmp.eq.s32.totalorder %s18, 1
    %p129 = por %p127, %p128
    %p130 = scmp.ne.s32.totalorder %s122, %s125
    %p131 = scmp.eq.s32.totalorder %s18, 0
    %p132 = por %p130, %p131
    %p133 = scmp.ne.s32.totalorder %s122, %s125
    %p134 = scmp.eq.s32.totalorder %s23, 1
    %p135 = por %p133, %p134
    %p136 = scmp.ne.s32.totalorder %s125, %s126
    %p137 = scmp.eq.s32.totalorder %s23, 0
    %p138 = por %p136, %p137
    %p139 = scmp.ne.s32.totalorder %s125, %s126
    %p140 = scmp.eq.s32.totalorder %s24, 1
    %p141 = por %p139, %p140
    %p143 = scmp.ne.s32.totalorder %s126, %s142
    %p144 = scmp.eq.s32.totalorder %s24, 0
    %p145 = por %p143, %p144
    %s147 = sadd.s32 %s146, 1
    %p150 = scmp.eq.s32.totalorder %s18, 1
    %p151 = scmp.ne.s32.totalorder %s146, %s148
    %p152 = scmp.eq.s32.totalorder %s18, 0
    %p153 = por %p151, %p152
    %p154 = scmp.ne.s32.totalorder %s146, %s148
    %p155 = scmp.eq.s32.totalorder %s23, 1
    %p156 = por %p154, %p155
    %p157 = scmp.ne.s32.totalorder %s148, %s149
    %p158 = scmp.eq.s32.totalorder %s23, 0
    %p159 = por %p157, %p158
    %p160 = scmp.ne.s32.totalorder %s148, %s149
    %p161 = scmp.eq.s32.totalorder %s24, 1
    %p162 = por %p160, %p161
    %p164 = scmp.ne.s32.totalorder %s149, %s163
    %p165 = scmp.eq.s32.totalorder %s24, 0
    %p166 = por %p164, %p165
    %s168 = sadd.s32 %s167, 1
    %p171 = scmp.eq.s32.totalorder %s18, 1
    %p172 = scmp.ne.s32.totalorder %s167, %s169
    %p173 = scmp.eq.s32.totalorder %s18, 0
    %p174 = por %p172, %p173
    %p175 = scmp.ne.s32.totalorder %s167, %s169
    %p176 = scmp.eq.s32.totalorder %s23, 1
    %p177 = por %p175, %p176
    %p178 = scmp.ne.s32.totalorder %s169, %s170
    %p179 = scmp.eq.s32.totalorder %s23, 0
    %p180 = por %p178, %p179
    %p181 = scmp.ne.s32.totalorder %s169, %s170
    %p182 = scmp.eq.s32.totalorder %s24, 1
    %p183 = por %p181, %p182
    %p185 = scmp.ne.s32.totalorder %s170, %s184
    %p186 = scmp.eq.s32.totalorder %s24, 0
    %p187 = por %p185, %p186
    %s189 = sadd.s32 %s188, 1
    %p192 = scmp.eq.s32.totalorder %s18, 1
    %p193 = scmp.ne.s32.totalorder %s188, %s190
    %p194 = scmp.eq.s32.totalorder %s18, 0
    %p195 = por %p193, %p194
    %p196 = scmp.ne.s32.totalorder %s188, %s190
    %p197 = scmp.eq.s32.totalorder %s23, 1
    %p198 = por %p196, %p197
    %p199 = scmp.ne.s32.totalorder %s190, %s191
    %p200 = scmp.eq.s32.totalorder %s23, 0
    %p201 = por %p199, %p200
    %p202 = scmp.ne.s32.totalorder %s190, %s191
    %p203 = scmp.eq.s32.totalorder %s24, 1
    %p204 = por %p202, %p203
    %p206 = scmp.ne.s32.totalorder %s191, %s205
    %p207 = scmp.eq.s32.totalorder %s24, 0
    %p208 = por %p206, %p207
    %s210 = sadd.s32 %s209, 1
    %p213 = scmp.eq.s32.totalorder %s18, 1
    %p214 = scmp.ne.s32.totalorder %s209, %s211
    %p215 = scmp.eq.s32.totalorder %s18, 0
    %p216 = por %p214, %p215
    %p217 = scmp.ne.s32.totalorder %s209, %s211
    %p218 = scmp.eq.s32.totalorder %s23, 1
    %p219 = por %p217, %p218
    %p220 = scmp.ne.s32.totalorder %s211, %s212
    %p221 = scmp.eq.s32.totalorder %s23, 0
    %p222 = por %p220, %p221
    %p223 = scmp.ne.s32.totalorder %s211, %s212
    %p224 = scmp.eq.s32.totalorder %s24, 1
    %p225 = por %p223, %p224
    %p227 = scmp.ne.s32.totalorder %s212, %s226
    %p228 = scmp.eq.s32.totalorder %s24, 0
    %p229 = por %p227, %p228
    %s231 = sadd.s32 %s230, 1
    %p234 = scmp.eq.s32.totalorder %s18, 1
    %p235 = scmp.ne.s32.totalorder %s230, %s232
    %p236 = scmp.eq.s32.totalorder %s18, 0
    %p237 = por %p235, %p236
    %p238 = scmp.ne.s32.totalorder %s230, %s232
    %p239 = scmp.eq.s32.totalorder %s23, 1
    %p240 = por %p238, %p239
    %p241 = scmp.ne.s32.totalorder %s232, %s233
    %p242 = scmp.eq.s32.totalorder %s23, 0
    %p243 = por %p241, %p242
    %p244 = scmp.ne.s32.totalorder %s232, %s233
    %p245 = scmp.eq.s32.totalorder %s24, 1
    %p246 = por %p244, %p245
    %p248 = scmp.ne.s32.totalorder %s233, %s247
    %p249 = scmp.eq.s32.totalorder %s24, 0
    %p250 = por %p248, %p249
    %s252 = sadd.s32 %s251, 1
    %p255 = scmp.eq.s32.totalorder %s18, 1
    %p256 = scmp.ne.s32.totalorder %s251, %s253
    %p257 = scmp.eq.s32.totalorder %s18, 0
    %p258 = por %p256, %p257
    %p259 = scmp.ne.s32.totalorder %s251, %s253
    %p260 = scmp.eq.s32.totalorder %s23, 1
    %p261 = por %p259, %p260
    %p262 = scmp.ne.s32.totalorder %s253, %s254
    %p263 = scmp.eq.s32.totalorder %s23, 0
    %p264 = por %p262, %p263
    %p265 = scmp.ne.s32.totalorder %s253, %s254
    %p266 = scmp.eq.s32.totalorder %s24, 1
    %p267 = por %p265, %p266
    %p269 = scmp.ne.s32.totalorder %s254, %s268
    %p270 = scmp.eq.s32.totalorder %s24, 0
    %p271 = por %p269, %p270
    %s272 = ssub.s32 %s25, %s37
    %p273 = scmp.eq.s32.totalorder %s272, 0
    %s275 = sadd.s32 %s274, 1
    %s276 = scalar_select %p273, %s274, %s275
    %p279 = pneg %p273
    %p280 = scmp.eq.s32.totalorder %s18, 1
    %p281 = por %p279, %p280
    %p282 = scmp.ne.s32.totalorder %s274, %s277
    %p283 = scmp.eq.s32.totalorder %s18, 0
    %p284 = por %p282, %p283
    %p285 = scmp.ne.s32.totalorder %s274, %s277
    %p286 = scmp.eq.s32.totalorder %s23, 1
    %p287 = por %p285, %p286
    %p288 = scmp.ne.s32.totalorder %s277, %s278
    %p289 = scmp.eq.s32.totalorder %s23, 0
    %p290 = por %p288, %p289
    %p291 = scmp.ne.s32.totalorder %s277, %s278
    %p292 = scmp.eq.s32.totalorder %s24, 1
    %p293 = por %p291, %p292
    %p295 = scmp.ne.s32.totalorder %s278, %s294
    %p296 = scmp.eq.s32.totalorder %s24, 0
    %p297 = por %p295, %p296
    %p298 = scmp.le.s32.totalorder 1, %s18
    %p299 = scmp.lt.s32.totalorder %s18, 3
    %p300 = pnand %p298, %p299
    %p301 = pneg %p300
    // Predicated region
    $region9: #{tpu_custom_call.1} parent=5 // pred_check
      _
    $region10: #{tpu_custom_call.1} parent=5 // pred_check_branch
      %303 = sbr.rel (%p300) target = $region12
    $region11: #{tpu_custom_call.1} parent=5 // pred_region
      %s304 = ssub.s32 %s18, 1
      // Predicated region
      $region13: #{tpu_custom_call.1} parent=11 // pred_check
        %p305 = pneg %p112
      $region14: #{tpu_custom_call.1} parent=11 // pred_check_branch
        %307 = sbr.rel (%p305) target = $region16
      $region15: #{tpu_custom_call.1} parent=11 // pred_region
        %p308 = scmp.lt.s32.totalorder %s27, 0
        %s309 = scalar_select %p308, %s27, 0
        %s310 = smul.addr %s309, 8
        %s311 = scalar_lea.vmem %s3, %s310
      $region16: #{tpu_custom_call.1} parent=11 // pred_fallthru
        _
      // Predicated region
      $region17: #{tpu_custom_call.1} parent=11 // pred_check
        %p312 = pneg %p138
      $region18: #{tpu_custom_call.1} parent=11 // pred_check_branch
        %314 = sbr.rel (%p312) target = $region20
      $region19: #{tpu_custom_call.1} parent=11 // pred_region
        %p315 = scmp.lt.s32.totalorder %s27, 0
        %s316 = scalar_select %p315, %s27, 0
        %s317 = smul.addr %s316, 8
        %s318 = scalar_lea.vmem %s4, %s317
      $region20: #{tpu_custom_call.1} parent=11 // pred_fallthru
        _
      // Predicated region
      $region21: #{tpu_custom_call.1} parent=11 // pred_check
        %p319 = pneg %p159
      $region22: #{tpu_custom_call.1} parent=11 // pred_check_branch
        %321 = sbr.rel (%p319) target = $region24
      $region23: #{tpu_custom_call.1} parent=11 // pred_region
        _
      $region24: #{tpu_custom_call.1} parent=11 // pred_fallthru
        _
      // Predicated region
      $region25: #{tpu_custom_call.1} parent=11 // pred_check
        %p322 = pneg %p180
      $region26: #{tpu_custom_call.1} parent=11 // pred_check_branch
        %324 = sbr.rel (%p322) target = $region28
      $region27: #{tpu_custom_call.1} parent=11 // pred_region
        _
      $region28: #{tpu_custom_call.1} parent=11 // pred_fallthru
        _
      // Predicated region
      $region29: #{tpu_custom_call.1} parent=11 // pred_check
        %p325 = pneg %p201
      $region30: #{tpu_custom_call.1} parent=11 // pred_check_branch
        %327 = sbr.rel (%p325) target = $region32
      $region31: #{tpu_custom_call.1} parent=11 // pred_region
        _
      $region32: #{tpu_custom_call.1} parent=11 // pred_fallthru
        _
      // Predicated region
      $region33: #{tpu_custom_call.1} parent=11 // pred_check
        %p328 = pneg %p222
      $region34: #{tpu_custom_call.1} parent=11 // pred_check_branch
        %330 = sbr.rel (%p328) target = $region36
      $region35: #{tpu_custom_call.1} parent=11 // pred_region
        _
      $region36: #{tpu_custom_call.1} parent=11 // pred_fallthru
        _
      // Predicated region
      $region37: #{tpu_custom_call.1} parent=11 // pred_check
        %p331 = pneg %p243
      $region38: #{tpu_custom_call.1} parent=11 // pred_check_branch
        %333 = sbr.rel (%p331) target = $region40
      $region39: #{tpu_custom_call.1} parent=11 // pred_region
        _
      $region40: #{tpu_custom_call.1} parent=11 // pred_fallthru
        _
      // Predicated region
      $region41: #{tpu_custom_call.1} parent=11 // pred_check
        %p334 = pneg %p264
      $region42: #{tpu_custom_call.1} parent=11 // pred_check_branch
        %336 = sbr.rel (%p334) target = $region44
      $region43: #{tpu_custom_call.1} parent=11 // pred_region
        _
      $region44: #{tpu_custom_call.1} parent=11 // pred_fallthru
        _
    $region12: #{tpu_custom_call.1} parent=5 // pred_fallthru
      _
    %p337 = scmp.lt.s32.totalorder %s18, 2
    // Predicated region
    $region45: #{tpu_custom_call.1} parent=5 // pred_check
      %p338 = pneg %p337
    $region46: #{tpu_custom_call.1} parent=5 // pred_check_branch
      %340 = sbr.rel (%p338) target = $region48
    $region47: #{tpu_custom_call.1} parent=5 // pred_region
      // Predicated region
      $region49: #{tpu_custom_call.1} parent=47 // pred_check
        %p341 = pneg %p52
      $region50: #{tpu_custom_call.1} parent=47 // pred_check_branch
        %343 = sbr.rel (%p341) target = $region52
      $region51: #{tpu_custom_call.1} parent=47 // pred_region
        %s344 = smul.u32 128, %s26
        %p345 = scmp.lt.s32.totalorder %s344, 255
        %s346 = scalar_select %p345, %s344, 255
        %p347 = scmp.lt.s32.totalorder %s25, 0
        %s348 = scalar_select %p347, %s25, 0
        %s349 = sadd.s32 %s348, %s346
        %s350 = smul.addr %s349, 4
        %s351 = scalar_lea.vmem %s1, %s350
        %s352 = smul.u32 128, %s26
      $region52: #{tpu_custom_call.1} parent=47 // pred_fallthru
        _
      // Predicated region
      $region53: #{tpu_custom_call.1} parent=47 // pred_check
        %p353 = pneg %p80
      $region54: #{tpu_custom_call.1} parent=47 // pred_check_branch
        %355 = sbr.rel (%p353) target = $region56
      $region55: #{tpu_custom_call.1} parent=47 // pred_region
        %s356 = smul.u32 128, %s26
        %p357 = scmp.lt.s32.totalorder %s356, 255
        %s358 = scalar_select %p357, %s356, 255
        %p359 = scmp.lt.s32.totalorder %s25, 0
        %s360 = scalar_select %p359, %s25, 0
        %s361 = sadd.s32 %s360, %s358
        %s362 = smul.addr %s361, 8
        %s363 = scalar_lea.vmem %s2, %s362
        %s364 = smul.u32 128, %s26
      $region56: #{tpu_custom_call.1} parent=47 // pred_fallthru
        _
    $region48: #{tpu_custom_call.1} parent=5 // pred_fallthru
      _
    %p365 = scmp.le.s32.totalorder 1, %s18
    %p366 = scmp.lt.s32.totalorder %s18, 3
    %p367 = pnand %p365, %p366
    %p368 = pneg %p367
    // Predicated region
    $region57: #{tpu_custom_call.1} parent=5 // pred_check
      _
    $region58: #{tpu_custom_call.1} parent=5 // pred_check_branch
      %370 = sbr.rel (%p367) target = $region60
    $region59: #{tpu_custom_call.1} parent=5 // pred_region
      %s371 = ssub.s32 %s18, 1
      %s372 = smul.u32 128, %s28
      %p373 = scmp.lt.s32.totalorder %s372, 255
      %s374 = scalar_select %p373, %s372, 255
      %p375 = scmp.lt.s32.totalorder %s27, 0
      %s376 = scalar_select %p375, %s27, 0
      %s377 = sadd.s32 %s376, %s374
      %s378 = smul.addr %s377, 4
      %s379 = scalar_lea.vmem %s1, %s378
      %p380 = pneg %p58
      %p381 = pneg %p55
      %s382 = smul.u32 128, %s28
      %p383 = scmp.lt.s32.totalorder %s382, 255
      %s384 = scalar_select %p383, %s382, 255
      %p385 = scmp.lt.s32.totalorder %s27, 0
      %s386 = scalar_select %p385, %s27, 0
      %s387 = sadd.s32 %s386, %s384
      %s388 = smul.addr %s387, 8
      %s389 = scalar_lea.vmem %s2, %s388
      %p390 = pneg %p86
      %p391 = pneg %p83
      %p392 = scmp.lt.s32.totalorder %s27, 0
      %s393 = scalar_select %p392, %s27, 0
      %s394 = smul.addr %s393, 8
      %s395 = scalar_lea.vmem %s3, %s394
      %p396 = pneg %p112
      %p397 = pneg %p109
      %p398 = scmp.lt.s32.totalorder %s27, 0
      %s399 = scalar_select %p398, %s27, 0
      %s400 = smul.addr %s399, 8
      %s401 = scalar_lea.vmem %s4, %s400
      %p402 = pneg %p138
      %p403 = pneg %p135
      %p404 = pneg %p159
      %p405 = pneg %p156
      %p406 = pneg %p180
      %p407 = pneg %p177
      %p408 = pneg %p201
      %p409 = pneg %p198
      %p410 = pneg %p222
      %p411 = pneg %p219
      %p412 = pneg %p243
      %p413 = pneg %p240
      %p414 = pneg %p264
      %p415 = pneg %p261
      %p416 = pneg %p290
      %p417 = pneg %p287
      %p418 = scmp.lt.s32.totalorder %s27, 0
      %s419 = scalar_select %p418, %s27, 0
      %s420 = smul.addr %s419, 8
      %s421 = scalar_lea.vmem %s11, %s420
      %s422 = smul.u32 128, %s28
      %p423 = scmp.lt.s32.totalorder %s422, 255
      %s424 = scalar_select %p423, %s422, 255
      %p425 = scmp.lt.s32.totalorder %s27, 0
      %s426 = scalar_select %p425, %s27, 0
      %s427 = sadd.s32 %s426, %s424
      %s428 = smul.addr %s427, 4
      %s429 = scalar_lea.vmem %s1, %s428
      %s430 = smul.u32 128, %s28
      %s431 = smul.u32 128, %s28
      %p432 = scmp.lt.s32.totalorder %s431, 255
      %s433 = scalar_select %p432, %s431, 255
      %p434 = scmp.lt.s32.totalorder %s27, 0
      %s435 = scalar_select %p434, %s27, 0
      %s436 = sadd.s32 %s435, %s433
      %s437 = smul.addr %s436, 8
      %s438 = scalar_lea.vmem %s2, %s437
      %s439 = smul.u32 128, %s28
      %p440 = scmp.lt.s32.totalorder %s27, 0
      %s441 = scalar_select %p440, %s27, 0
      %s442 = smul.addr %s441, 8
      %s443 = scalar_lea.vmem %s3, %s442
      %p444 = scmp.lt.s32.totalorder %s27, 0
      %s445 = scalar_select %p444, %s27, 0
      %s446 = smul.addr %s445, 8
      %s447 = scalar_lea.vmem %s4, %s446
      %p448 = scmp.lt.s32.totalorder %s27, 0
      %s449 = scalar_select %p448, %s27, 0
      %s450 = smul.addr %s449, 8
      %s451 = scalar_lea.vmem %s11, %s450
      %s453 = smul.u32 %s28, 128
      %v454 = vld [vmem:[%s443] sm:$0xff]
      %v455 = vld [vmem:[%s8] sm:$0x1]
      %v456 = vld [vmem:[%s9] sm:$0x1]
      %v457 = vld [vmem:[%s10] sm:$0x1]
      %v458 = vlaneseq
      %v459 = vand.u32 %v458, 127
      %s460 = sld [smem:[#allocation6 + %s27]]
      %p461 = scmp.lt.s32.totalorder %s453, %s460
      // Predicated region
      $region61: #{tpu_custom_call.1} parent=59 // pred_check
        %p462 = pneg %p461
      $region62: #{tpu_custom_call.1} parent=59 // pred_check_branch
        %464 = sbr.rel (%p462) target = $region64
      $region63: #{tpu_custom_call.1} parent=59 // pred_region
        %v465 = vld [vmem:[%s5] sm:$0xf]
        %v466 = vld [vmem:[%s5 + $0x4] sm:$0xf]
        %v467 = vld [vmem:[%s5 + $0x8] sm:$0xf]
        %v468 = vld [vmem:[%s5 + $0xc] sm:$0xf]
        %v469 = vld [vmem:[%s6] sm:$0x1]
        %v470 = vld [vmem:[%s7] sm:$0xff]
        %v471 = vld [vmem:[%s7 + $0x8] sm:$0xff]
        %v472 = vld [vmem:[%s7 + $0x10] sm:$0xff]
        %v473 = vld [vmem:[%s7 + $0x18] sm:$0xff]
        %v474 = vld [vmem:[%s7 + $0x20] sm:$0xff]
        %v475 = vld [vmem:[%s7 + $0x28] sm:$0xff]
        %v476 = vld [vmem:[%s7 + $0x30] sm:$0xff]
        %v477 = vld [vmem:[%s7 + $0x38] sm:$0xff]
        %v478 = vld [vmem:[%s7 + $0x40] sm:$0xff]
        %v479 = vld [vmem:[%s7 + $0x48] sm:$0xff]
        %v480 = vld [vmem:[%s7 + $0x50] sm:$0xff]
        %v481 = vld [vmem:[%s7 + $0x58] sm:$0xff]
        %v482 = vld [vmem:[%s7 + $0x60] sm:$0xff]
        %v483 = vld [vmem:[%s7 + $0x68] sm:$0xff]
        %v484 = vld [vmem:[%s7 + $0x70] sm:$0xff]
        %v485 = vld [vmem:[%s7 + $0x78] sm:$0xff]
        loop: start=0, step=1, limit=128
        $region65: #{tpu_custom_call.1} parent=63 // loop_pre_header
          _
        $region66: #{tpu_custom_call.1} parent=63 // loop_header
          %s487 = sphi 0, %s491
          %p488 = scmp.ge.s32.totalorder %s487, 128
        $region67: #{tpu_custom_call.1} parent=63 // loop_header_branch
          %490 = sbr.rel (%p488) target = $region71
        $region68: #{tpu_custom_call.1} parent=63 // loop_body
          %s492 = smul.addr %s487, 4
          %s493 = scalar_lea.vmem %s429, %s492
          %v494 = vld [vmem:[%s493] sm:$0xf]
          %v496 = vperm.slane %v469, 0
          %v502 = vunpack.c.l.b16 %v465
          %v503 = vunpack.c.l.b16 %v466
          %v504 = vunpack.c.l.b16 %v467
          %v505 = vunpack.c.l.b16 %v468
          %v506 = vpack.c.b16 %v503, %v502
          %v507 = vpack.c.b16 %v505, %v504
          %vm510 = vcmask 261120
          %v512 = vsel %vm510, %v494, 0
          %514 = vmatpush.bf16.msra.mxu0 0
          %515 = vmatpush.bf16.msra.mxu0 0
          %516 = vmatpush.bf16.msra.mxu0 0
          %517 = vmatpush.bf16.msra.mxu0 0
          %518 = vmatpush.bf16.msra.mxu0 0
          %519 = vmatpush.bf16.msra.mxu0 0
          %520 = vmatpush.bf16.msra.mxu0 %v507
          %521 = vmatpush.bf16.msra.mxu0 %v506
          %522 = vmatmul.bf16.gmra.mxu0 %v512
          %v523 = vpop.f32.mrf.mxu0
          %v524 = vadd.f32 %v496, %v523
          %v525 = vpop.f32.mrf.mxu0
          %526 = vdwg.mxu0
          %s527 = smul.u32 %s487, 8
          %s528 = scalar_lea.vmem [#allocation2], %s527
          %529 = vst [vmem:[%s528] sm:$0xff] %v524
        $region69: #{tpu_custom_call.1} parent=63 // loop_footer
          %s491 = sadd.s32 1, %s487
        $region70: #{tpu_custom_call.1} parent=63 // loop_footer_branch
          %486 = sbr.rel target = $region66
        $region71: #{tpu_custom_call.1} parent=63 // loop_exit
          _
        %p530 = scmp.eq.s32.totalorder %s28, 0
        // Predicated region
        $region72: #{tpu_custom_call.1} parent=63 // pred_check
          %p531 = pneg %p530
        $region73: #{tpu_custom_call.1} parent=63 // pred_check_branch
          %533 = sbr.rel (%p531) target = $region75
        $region74: #{tpu_custom_call.1} parent=63 // pred_region
          %v534 = vld [vmem:[#allocation2] sm:$0xff]
          %v535 = vld [vmem:[%s438] sm:$0xff]
          %536 = vset.pattern.permute.xlu0 0
          %537 = vperm.xlu0 %536, %v535
          %v538 = vpop.permute.xlu0 %537
          %vm539 = vcmp.eq.s32.totalorder %v459, %v538
          %v540 = vsel %vm539, 1, 0
          %v541 = vcvt.s32.f32 %v540
          %v543 = vperm.slane %v456, 0
          %v545 = vadd.f32 %v534, %v543
          %546 = vst [vmem:[#allocation3] sm:$0xff] %v545
          %v547 = vmul.f32 %v534, %v541
          %548 = vadd.xlane.f32.xlu0 %v547
          %v549 = vpop.xlane.xlu0 %548
          %v550 = vld [vmem:[%s447] sm:$0xff]
          %vm551 = vcmp.gt.s32.totalorder %v454, 0
          %v552 = vsel %vm551, %v549, 0.0
          %v553 = vadd.f32 %v550, %v552
          %vm554 = vcmask 7168
          %555 = vst.msk [vmem:[#allocation4] sm:$0xff] %vm554, %v553
        $region75: #{tpu_custom_call.1} parent=63 // pred_fallthru
          _
        %s556 = scalar_select %p530, 1, 0
        // While loop
        $region76: #{tpu_custom_call.1} parent=63 // loop_pre_header
          _
        $region77: #{tpu_custom_call.1} parent=63 // loop_header
          %s558 = sphi %s556, %s560
          %p559 = scmp.ge.s32.totalorder %s558, 128
        $region78: #{tpu_custom_call.1} parent=63 // loop_header_branch
          %562 = sbr.rel (%p559) target = $region82
        $region79: #{tpu_custom_call.1} parent=63 // loop_body
          %s563 = sadd.s32 %s453, %s558
          %v564 = vld [vmem:[#allocation3] sm:$0xff]
          %s565 = smul.u32 %s558, 8
          %s566 = scalar_lea.vmem [#allocation2], %s565
          %v567 = vld [vmem:[%s566] sm:$0xff]
          %v568 = vstv %s563
          %vm569 = vcmp.lt.s32.totalorder %v568, %v454
          %570 = vmax.xlane.f32.xlu0 %v564
          %v571 = vpop.xlane.xlu0 %570
          %v572 = vsub.f32 %v564, %v571
          %v573 = vmul.f32 %v572, 1.442695
          %v574 = vpow.pop %v573
          %575 = vmatpush.msra.mxu0 %v485
          %576 = vmatpush.msra.mxu0 %v484
          %577 = vmatpush.msra.mxu0 %v483
          %578 = vmatpush.msra.mxu0 %v482
          %579 = vmatpush.msra.mxu0 %v481
          %580 = vmatpush.msra.mxu0 %v480
          %581 = vmatpush.msra.mxu0 %v479
          %582 = vmatpush.msra.mxu0 %v478
          %583 = vmatpush.msra.mxu0 %v477
          %584 = vmatpush.msra.mxu0 %v476
          %585 = vmatpush.msra.mxu0 %v475
          %586 = vmatpush.msra.mxu0 %v474
          %587 = vmatpush.msra.mxu0 %v473
          %588 = vmatpush.msra.mxu0 %v472
          %589 = vmatpush.msra.mxu0 %v471
          %590 = vmatpush.msra.mxu0 %v470
          %591 = vmatmul.f32.gmra.mxu0 %v574
          %v592 = vpop.f32.mrf.mxu0
          %v593 = vadd.f32 0.0, %v592
          %594 = vdwg.mxu0
          %v595 = vadd.f32 %v567, %v571
          %v597 = vperm.slane %v455, 0
          %v599 = vadd.f32 %v595, %v597
          %v600 = vmax.f32 %v593, 1e-37
          %v601 = vlog2.pop %v600
          %v602 = vmul.f32 %v601, 0.6931472
          %v603 = vadd.f32 %v599, %v602
          %v604 = vsel %vm569, 1, 0
          %605 = vset.pattern.permute.xlu0 0
          %606 = vperm.xlu0 %605, %v604
          %v607 = vpop.permute.xlu0 %606
          %vm608 = vcmp.eq.s32.totalorder %v607, 1
          %v609 = vsel %vm608, %v603, %v564
          %610 = vst [vmem:[#allocation3] sm:$0xff] %v609
          %s611 = scalar_lea.vmem %s438, %s565
          %v612 = vld [vmem:[%s611] sm:$0xff]
          %613 = vset.pattern.permute.xlu0 0
          %614 = vperm.xlu0 %613, %v612
          %v615 = vpop.permute.xlu0 %614
          %vm616 = vcmp.eq.s32.totalorder %v459, %v615
          %v617 = vsel %vm616, 1, 0
          %v618 = vcvt.s32.f32 %v617
          %v619 = vmul.f32 %v567, %v618
          %620 = vadd.xlane.f32.xlu0 %v619
          %v621 = vpop.xlane.xlu0 %620
          %v622 = vld [vmem:[#allocation4] sm:$0xff]
          %v623 = vsel %vm569, %v621, 0.0
          %v624 = vadd.f32 %v622, %v623
          %vm625 = vcmask 7168
          %626 = vst.msk [vmem:[#allocation4] sm:$0xff] %vm625, %v624
        $region80: #{tpu_custom_call.1} parent=63 // loop_footer
          %s560 = sadd.s32 %s558, 1
        $region81: #{tpu_custom_call.1} parent=63 // loop_footer_branch
          %557 = sbr.rel target = $region77
        $region82: #{tpu_custom_call.1} parent=63 // loop_exit
          _
      $region64: #{tpu_custom_call.1} parent=59 // pred_fallthru
        _
      %p627 = scmp.eq.s32.totalorder %s28, 1
      // Predicated region
      $region83: #{tpu_custom_call.1} parent=59 // pred_check
        %p628 = pneg %p627
      $region84: #{tpu_custom_call.1} parent=59 // pred_check_branch
        %630 = sbr.rel (%p628) target = $region86
      $region85: #{tpu_custom_call.1} parent=59 // pred_region
        %v631 = vld [vmem:[#allocation3] sm:$0xff]
        %v633 = vperm.slane %v457, 0
        %v635 = vadd.f32 %v631, %v633
        %636 = vmax.xlane.f32.xlu0 %v635
        %v637 = vpop.xlane.xlu0 %636
        %v638 = vsub.f32 %v635, %v637
        %v639 = vmul.f32 %v638, 1.442695
        %v640 = vpow.pop %v639
        %641 = vadd.xlane.f32.xlu0 %v640
        %v642 = vpop.xlane.xlu0 %641
        %v643 = vlog2.pop %v642
        %v644 = vmul.f32 %v643, 0.6931472
        %v645 = vadd.f32 %v644, %v637
        %v646 = vld [vmem:[#allocation4] sm:$0xff]
        %v647 = vsub.f32 %v645, %v646
        %vm648 = vcmask 7168
        %649 = vst.msk [vmem:[%s451] sm:$0xff] %vm648, %v647
      $region86: #{tpu_custom_call.1} parent=59 // pred_fallthru
        _
      %p650 = scmp.lt.s32.totalorder %s27, 0
      %s651 = scalar_select %p650, %s27, 0
      %s652 = smul.addr %s651, 8
      %s653 = scalar_lea.vmem %s11, %s652
      // Predicated region
      $region87: #{tpu_custom_call.1} parent=59 // pred_check
        %p654 = pneg %p287
      $region88: #{tpu_custom_call.1} parent=59 // pred_check_branch
        %656 = sbr.rel (%p654) target = $region90
      $region89: #{tpu_custom_call.1} parent=59 // pred_region
        _
      $region90: #{tpu_custom_call.1} parent=59 // pred_fallthru
        _
      // Predicated region
      $region91: #{tpu_custom_call.1} parent=59 // pred_check
        %p657 = pneg %p287
      $region92: #{tpu_custom_call.1} parent=59 // pred_check_branch
        %659 = sbr.rel (%p657) target = $region94
      $region93: #{tpu_custom_call.1} parent=59 // pred_region
        %p660 = scmp.lt.s32.totalorder %s27, 0
        %s661 = scalar_select %p660, %s27, 0
        %s662 = smul.addr %s661, 8
        %s663 = scalar_lea.vmem %s11, %s662
      $region94: #{tpu_custom_call.1} parent=59 // pred_fallthru
        _
    $region60: #{tpu_custom_call.1} parent=5 // pred_fallthru
      _
    %p664 = scmp.le.s32.totalorder 2, %s18
    // Predicated region
    $region95: #{tpu_custom_call.1} parent=5 // pred_check
      %p665 = pneg %p664
    $region96: #{tpu_custom_call.1} parent=5 // pred_check_branch
      %667 = sbr.rel (%p665) target = $region98
    $region97: #{tpu_custom_call.1} parent=5 // pred_region
      %s668 = ssub.s32 %s18, 2
    $region98: #{tpu_custom_call.1} parent=5 // pred_fallthru
      _
  $region6: #{tpu_custom_call.1} parent=0 // loop_footer
    %s22 = sadd.s32 1, %s18
  $region7: #{tpu_custom_call.1} parent=0 // loop_footer_branch
    %17 = sbr.rel target = $region3
  $region8: #{tpu_custom_call.1} parent=0 // loop_exit
    _

</llo_original>
